<compile_context>
chip_gen: v6e
topology: v6e:2x2x1
jax: 0.10.0
libtpu: 0.0.40
codegen_flags: <defaults>
</compile_context>

<pallas_src>
import functools

import jax
import jax.numpy as jnp
from jax.experimental import pallas as pl
from jax.experimental.pallas import tpu as pltpu


# ---------------------------------------------------------------------------
# Kernel
# ---------------------------------------------------------------------------
def _pooler_head_kernel(x_ref, o_ref, *, normalize: bool, softmax: bool,
                        approx_recip: bool):
    # x_ref / o_ref: (tile_rows, hidden) VMEM tiles. All reductions are
    # row-wise (last axis), so a ragged/garbage last block is safe: invalid
    # rows are never written back and never mix into valid rows.
    x = x_ref[...].astype(jnp.float32)

    if normalize:
        # F.normalize(p=2, dim=1): x / max(||x||_2, 1e-12)  (eps folded into
        # the rsqrt argument; sqrt is monotone so this is equivalent).
        sq_sum = jnp.sum(x * x, axis=-1, keepdims=True)
        x = x * jax.lax.rsqrt(jnp.maximum(sq_sum, 1e-24))

    if softmax:
        if not normalize:
            # Numerically stable softmax. When normalize=True the inputs are
            # already in [-1, 1], so exp cannot overflow and the max-subtract
            # (XLU cross-lane max + VALU sub) is skipped.
            x = x - jnp.max(x, axis=-1, keepdims=True)
        e = jnp.exp(x)
        s = jnp.sum(e, axis=-1, keepdims=True)
        x = e * pl.reciprocal(s, approx=approx_recip)

    o_ref[...] = x.astype(o_ref.dtype)


# ---------------------------------------------------------------------------
# Tiling helpers
# ---------------------------------------------------------------------------
_TARGET_TILE_BYTES = 3 * 1024 * 1024   # ~3 MiB of in-dtype data per grid step


@functools.lru_cache(maxsize=1)
def _vmem_budgets():
    """(vmem_limit_bytes, tile_budget_bytes), gated on physical VMEM size."""
    limit, budget = 32 * 1024 * 1024, 20 * 1024 * 1024  # safe on v7x (64 MiB)
    try:
        cap = getattr(pltpu.get_tpu_info(), "vmem_capacity_bytes", None)
        if cap is not None and cap >= 128 * 1024 * 1024:  # v5e / v6e
            limit, budget = 64 * 1024 * 1024, 40 * 1024 * 1024
    except Exception:
        pass
    return limit, budget


def _sublane_multiple(dtype) -> int:
    # Sub-32-bit dtypes pack along sublanes: f32 -> 8, bf16 -> 16, int8 -> 32.
    itemsize = jnp.dtype(dtype).itemsize
    return max(8, 32 // max(itemsize, 1))


def _round_up(x: int, m: int) -> int:
    return ((x + m - 1) // m) * m


def _pick_tile_rows(n: int, h: int, dtype, normalize: bool, softmax: bool) -> int:
    """Row tile: ~3 MiB per block, within the VMEM budget, sublane-aligned."""
    itemsize = jnp.dtype(dtype).itemsize
    sub = _sublane_multiple(dtype)

    # Per-row VMEM: double-buffered in + out tiles plus live f32 intermediates
    # (3 copies when both normalize and softmax are enabled, else 2).
    f32_live = 12 if (normalize and softmax) else 8
    bytes_per_row = h * (2 * itemsize + 2 * itemsize + f32_live)

    _, tile_budget = _vmem_budgets()
    budget_rows = max(sub, tile_budget // max(bytes_per_row, 1))
    target_rows = max(sub, _TARGET_TILE_BYTES // max(h * itemsize, 1))
    tile = min(budget_rows, target_rows)
    tile = max(sub, (tile // sub) * sub)

    if tile >= n:
        if n <= 2 * sub:
            # Tiny input: single full block ("equal full dims" is allowed even
            # when n is not a multiple of the sublane packing).
            return n
        # Guarantee >=2 grid steps so both v7x TensorCores get work on the
        # "parallel" axis (single-block launches leave one TC idle).
        return _round_up(pl.cdiv(n, 2), sub)

    # Balance blocks across the grid.
    grid = pl.cdiv(n, tile)
    tile = min(tile, _round_up(pl.cdiv(n, grid), sub))
    return max(sub, tile)


# ---------------------------------------------------------------------------
# Wrapper
# ---------------------------------------------------------------------------
def _run_single(x, normalize: bool, softmax: bool, tile_rows=None,
                donate_input: bool = True):
    n, h = x.shape
    itemsize = jnp.dtype(x.dtype).itemsize

    tile = (tile_rows if tile_rows is not None
            else _pick_tile_rows(n, h, x.dtype, normalize, softmax))
    tile = min(tile, n)
    grid = pl.cdiv(n, tile)

    vmem_limit, _ = _vmem_budgets()

    kernel = functools.partial(
        _pooler_head_kernel,
        normalize=normalize,
        softmax=softmax,
        # Exact reciprocal keeps f32 within 1e-5 of the reference; bf16 and
        # narrower outputs can take the EUP approximate reciprocal for free.
        approx_recip=(itemsize < 4),
    )

    # Memory-dominated cost hint for the XLA scheduler.
    cost = pl.CostEstimate(
        flops=((3 if normalize else 0) + (4 if softmax else 0)) * n * h,
        transcendentals=(n * h + n if softmax else 0) + (n if normalize else 0),
        bytes_accessed=2 * n * h * itemsize,
    )

    # NOTE: if H is not a multiple of 128 the output stores are masked
    # (vst.msk); real hidden sizes (e.g. 4096) are lane-dense. We deliberately
    # do NOT pad H: zero-padding the lane axis would corrupt the softmax sum.
    return pl.pallas_call(
        kernel,
        out_shape=jax.ShapeDtypeStruct((n, h), x.dtype),
        grid_spec=pltpu.PrefetchScalarGridSpec(
            num_scalar_prefetch=0,
            grid=(grid,),
            in_specs=[pl.BlockSpec((tile, h), lambda i: (i, 0))],
            out_specs=pl.BlockSpec((tile, h), lambda i: (i, 0)),
        ),
        compiler_params=pltpu.CompilerParams(
            dimension_semantics=("parallel",),
            vmem_limit_bytes=vmem_limit,
        ),
        cost_estimate=cost,
        # pooled_data is dead after PoolerHead in vLLM; reuse its HBM buffer
        # when the caller donates it (XLA inserts a copy otherwise).
        input_output_aliases=({0: 0} if donate_input else {}),
    )(x)


def pooler_head(pooled_data, *, normalize: bool, softmax: bool,
                tile_rows=None, donate_input: bool = True):
    """Applies PoolerHead.forward to a [N, H] array or a list of them."""
    if isinstance(pooled_data, (list, tuple)):
        # One pallas_call per tensor: the few-microsecond launch overhead is
        # far cheaper than a concatenate + slice round-trip (2 extra HBM
        # passes) on a purely memory-bound op.
        return [
            pooler_head(t, normalize=normalize, softmax=softmax,
                        tile_rows=tile_rows, donate_input=donate_input)
            for t in pooled_data
        ]

    if not (normalize or softmax):
        return pooled_data
    return _run_single(pooled_data, normalize, softmax, tile_rows, donate_input)


# ---------------------------------------------------------------------------
# Reference + test
# ---------------------------------------------------------------------------
def _reference(x, *, normalize: bool, softmax: bool):
    x = x.astype(jnp.float32)
    if normalize:
        norm = jnp.sqrt(jnp.sum(x * x, axis=1, keepdims=True))
        x = x / jnp.maximum(norm, 1e-12)
    if softmax:
        x = jax.nn.softmax(x, axis=-1)
    return x


if __name__ == "__main__":
    num_seqs, hidden = 8, 32

    def make_pooled(seed=0, n=num_seqs):
        return jax.random.normal(jax.random.PRNGKey(seed), (n, hidden),
                                 dtype=jnp.float32)

    ok = True
    for normalize, softmax in [(True, False), (False, True), (True, True)]:
        x = make_pooled()
        ref = _reference(make_pooled(), normalize=normalize, softmax=softmax)
        out = pooler_head(x, normalize=normalize, softmax=softmax)
        out = jax.block_until_ready(out)
        ok &= bool(jnp.allclose(out, ref.astype(out.dtype), atol=1e-5, rtol=1e-5))

    # Ragged-last-block path (no padding round trip): n=20, tile=8 -> grid of
    # 3 blocks with a partial final block.
    x_r = make_pooled(seed=1, n=20)
    ref_r = _reference(make_pooled(seed=1, n=20), normalize=True, softmax=True)
    out_r = pooler_head(x_r, normalize=True, softmax=True, tile_rows=8)
    out_r = jax.block_until_ready(out_r)
    ok &= bool(jnp.allclose(out_r, ref_r, atol=1e-5, rtol=1e-5))

    # List-input path (PoolerHead accepts list[Tensor]): one launch per tensor,
    # no concat/slice round-trip.
    xs = [make_pooled(), make_pooled() * 2.0]
    refs = [_reference(make_pooled(), normalize=True, softmax=False),
            _reference(make_pooled() * 2.0, normalize=True, softmax=False)]
    outs = pooler_head(xs, normalize=True, softmax=False)
    outs = jax.block_until_ready(outs)
    for o, r in zip(outs, refs):
        ok &= bool(jnp.allclose(o, r, atol=1e-5, rtol=1e-5))

    if ok:
        print("KERNEL_OK")
    else:
        print("KERNEL_MISMATCH")
</pallas_src>

<mosaic_0001>
module attributes {stable_mosaic.version = 11 : i64} {
  func.func @_pooler_head_kernel(%arg0: i32, %arg1: memref<8x32xf32, #tpu.memory_space<vmem>>, %arg2: memref<8x32xf32, #tpu.memory_space<vmem>>) attributes {dimension_semantics = [#tpu.dimension_semantics<parallel>], iteration_bounds = array<i64: 1>, scalar_prefetch = 0 : i64, scratch_operands = 0 : i64, tpu.core_type = #tpu.core_type<tc>, window_params = [{transform_indices = @transform_0, window_bounds = array<i64: 8, 32>}, {transform_indices = @transform_1, window_bounds = array<i64: 8, 32>}]} {
    %c0 = arith.constant 0 : index
    %c0_0 = arith.constant 0 : index
    %0 = vector.load %arg1[%c0, %c0_0] : memref<8x32xf32, #tpu.memory_space<vmem>>, vector<8x32xf32>
    %1 = arith.mulf %0, %0 : vector<8x32xf32>
    %cst = arith.constant dense<0.000000e+00> : vector<8xf32>
    %2 = vector.multi_reduction <add>, %1, %cst [1] : vector<8x32xf32> to vector<8xf32>
    %3 = vector.shape_cast %2 : vector<8xf32> to vector<8x1xf32>
    %cst_1 = arith.constant 1.000000e-24 : f32
    %4 = vector.broadcast %cst_1 : f32 to vector<8x1xf32>
    %5 = arith.maximumf %3, %4 : vector<8x1xf32>
    %6 = math.rsqrt %5 : vector<8x1xf32>
    %7 = vector.broadcast %6 : vector<8x1xf32> to vector<8x32xf32>
    %8 = arith.mulf %0, %7 : vector<8x32xf32>
    %c0_2 = arith.constant 0 : index
    %c0_3 = arith.constant 0 : index
    %9 = vector.load %arg2[%c0_2, %c0_3] : memref<8x32xf32, #tpu.memory_space<vmem>>, vector<8x32xf32>
    tpu.vector_store %arg2[%c0_2, %c0_3], %8 {strides = array<i32>} : memref<8x32xf32, #tpu.memory_space<vmem>>, vector<8x32xf32>,
    return
  }
  func.func @transform_0(%arg0: i32) -> (i32, i32) {
    %c0_i32 = arith.constant 0 : i32
    %c0_i32_0 = arith.constant 0 : i32
    return %arg0, %c0_i32 : i32, i32
  }
  func.func @transform_1(%arg0: i32) -> (i32, i32) {
    %c0_i32 = arith.constant 0 : i32
    %c0_i32_0 = arith.constant 0 : i32
    return %arg0, %c0_i32 : i32, i32
  }
}

</mosaic_0001>

<llo_original>
// kernel: tpu_custom_call.1
$region0: #{tpu_custom_call.1}
  #allocation0 [shape = 'u32[]', space=smem, size = 0x4, offset = 0x4, fixed_abs, tag = 'smem constant byte address 0x4 - core index']
  #allocation1 [shape = 'u32[144,128]{1,0:T(1,128)}', space=vmem, size = 0x12000, scoped, tag = 'internal scratch']
  %s0 = inlined_call_operand.hbm [shape: f32[8,32], index: 0, kind: input, shape index: {}, may-alias: {0,1}]
  %s1 = inlined_call_operand.hbm [shape: f32[8,32], index: 1, kind: output, shape index: {}, may-alias: {0,1}]
  %s2 = sld [smem:[#allocation0]]
  $region18: #{tpu_custom_call.1} parent=0
    _
  %s4 = ssub.s32 1, %s2
  %s5 = scalar_select 0, %s4, %s2
  $region1: #{tpu_custom_call.1} parent=0
    #allocation2 [shape = 'u8[4096]{0}', space=vmem, size = 0x1000, scoped, tag = 'input window, operand 0, single buffered']
    #allocation3 [shape = 's32[1]{0}', space=sflag, size = 0x4, scoped, tag = 'scoped memory for tpu_custom_call.1']
    #allocation4 [shape = 's32[1]{0}', space=sflag, size = 0x4, scoped, tag = 'scoped memory for tpu_custom_call.1']
    #allocation5 [shape = 'u8[4096]{0}', space=vmem, size = 0x1000, scoped, tag = 'output window, operand 0, single buffered']
    %6 = vsyncpa [#allocation3], 0
    %7 = vsyncpa [#allocation4], 0
    // Predicated region
    $region2: #{tpu_custom_call.1} parent=1 // pred_check
      _
    $region3: #{tpu_custom_call.1} parent=1 // pred_check_branch
      %9 = sbr.rel (0) target = $region5
    $region4: #{tpu_custom_call.1} parent=1 // pred_region
      %s11 = ssub.s32 128, 128
      %12 = vsyncadd [#allocation3], %s11
      %s14 = sshll.u32 [#allocation2], 4
      %s15 = int_to_ptr.vmem [resolvable:$true] %s14
      %17 = dma.hbm_to_vmem [thread:$0]  %s0, 128, %s15, [#allocation3]
    $region5: #{tpu_custom_call.1} parent=1 // pred_fallthru
      _
    // Predicated region
    $region6: #{tpu_custom_call.1} parent=1 // pred_check
      _
    $region7: #{tpu_custom_call.1} parent=1 // pred_check_branch
      %19 = sbr.rel (0) target = $region9
    $region8: #{tpu_custom_call.1} parent=1 // pred_region
      %20 = dma.done [#allocation3], 128
    $region9: #{tpu_custom_call.1} parent=1 // pred_fallthru
      _
    %v21 = vld [vmem:[#allocation2] sm:$0xff]
    %v22 = vmul.f32 %v21, %v21
    %vm23 = vcmask 261120
    %v24 = vsel %vm23, %v22, 0.0
    %25 = vadd.xlane.f32.xlu0 %v24
    %v26 = vpop.xlane.xlu0 %25
    %v27 = vmax.f32 %v26, 1e-24
    %v28 = vrsqrt.pop %v27
    %v29 = vmul.f32 %v21, %v28
    %30 = vst.msk [vmem:[#allocation5] sm:$0xff] %vm23, %v29
    // Predicated region
    $region10: #{tpu_custom_call.1} parent=1 // pred_check
      _
    $region11: #{tpu_custom_call.1} parent=1 // pred_check_branch
      %32 = sbr.rel (0) target = $region13
    $region12: #{tpu_custom_call.1} parent=1 // pred_region
      %s34 = ssub.s32 128, 128
      %35 = vsyncadd [#allocation4], %s34
      %s37 = sshll.u32 [#allocation5], 4
      %s38 = int_to_ptr.vmem [resolvable:$true] %s37
      %40 = dma.vmem_to_hbm [thread:$0]  %s38, 128, %s1, [#allocation4]
    $region13: #{tpu_custom_call.1} parent=1 // pred_fallthru
      _
    // Predicated region
    $region14: #{tpu_custom_call.1} parent=1 // pred_check
      _
    $region15: #{tpu_custom_call.1} parent=1 // pred_check_branch
      %42 = sbr.rel (0) target = $region17
    $region16: #{tpu_custom_call.1} parent=1 // pred_region
      %43 = dma.done [#allocation4], 128
    $region17: #{tpu_custom_call.1} parent=1 // pred_fallthru
      _
    %44 = vsyncpa [#allocation3], 1
    %45 = vsyncpa [#allocation4], 1

</llo_original>
